<compile_context>
chip_gen: v6e
topology: v6e:2x2x1
jax: 0.10.0
libtpu: 0.0.40
codegen_flags: <defaults>
</compile_context>

<pallas_src>
import functools

import jax
import jax.numpy as jnp
from jax.experimental import pallas as pl
from jax.experimental.pallas import tpu as pltpu


def _is_v7x():
    """Best-effort detection of a 2-TensorCore (v7x) part."""
    try:
        d = jax.devices()[0]
        if d.platform != "tpu":
            return False
        kind = str(getattr(d, "device_kind", "")).lower().replace(" ", "")
        return ("v7" in kind) or ("7x" in kind)
    except Exception:
        return False


def _focal_loss_kernel(x_ref, t_ref, at_ref, o_ref, acc_ref, *,
                       gamma, batch, block_rows, tiles_per_slice):
    p = pl.program_id(0)          # slice (maps to a TensorCore on v7x)
    i = pl.program_id(1)          # reduction step within the slice

    # Zero this slice's resident vector accumulator on its first step.
    @pl.when(i == 0)
    def _init():
        acc_ref[...] = jnp.zeros_like(acc_ref)

    x = x_ref[...].astype(jnp.float32)        # (TB, C) logits (cast in-kernel)
    t = t_ref[...]                            # (TB, 1) int32 labels
    alpha_t = at_ref[...]                     # (TB, 1) f32, precomputed gather

    # Numerically stable log-softmax pieces; only the target column is needed,
    # so we never materialize full log_probs / probs.
    m = jnp.max(x, axis=1, keepdims=True)                            # (TB, 1)
    shifted = x - m                                                  # (TB, C)
    lse = jnp.log(jnp.sum(jnp.exp(shifted), axis=1, keepdims=True))  # (TB, 1)

    # Target logit via a masked (select-based) lane reduction -- no f32 onehot
    # materialization, no extra (TB,C) multiply.
    col = jax.lax.broadcasted_iota(jnp.int32, x.shape, 1)            # (TB, C)
    shifted_t = jnp.sum(jnp.where(col == t, shifted, 0.0),
                        axis=1, keepdims=True)                       # (TB, 1)

    log_pt = shifted_t - lse                                         # (TB, 1)
    pt = jnp.exp(log_pt)                       # narrow (TB,1) exp, not (TB,C)
    one_minus_pt = 1.0 - pt

    # Specialize the focal term: avoid float-exponent pow for integer gammas.
    if gamma == 2.0:
        focal = one_minus_pt * one_minus_pt
    elif gamma == 1.0:
        focal = one_minus_pt
    elif gamma == 0.0:
        focal = jnp.ones_like(one_minus_pt)
    else:
        focal = one_minus_pt ** jnp.float32(gamma)

    loss = -alpha_t * focal * log_pt                                 # (TB, 1)

    # Mask rows past the end of the batch (ragged last tile, or a clamped
    # duplicate tile from the slice split). Keep this as a select -- garbage
    # rows may carry NaN/inf through exp/log, and select does not propagate.
    tile_idx = p * tiles_per_slice + i                 # un-clamped tile index
    row = (jax.lax.broadcasted_iota(jnp.int32, loss.shape, 0)
           + tile_idx * block_rows)
    loss = jnp.where(row < batch, loss, 0.0)

    acc_ref[...] += loss

    # Single sublane reduce + scalar store on the last step of this slice.
    @pl.when(i == tiles_per_slice - 1)
    def _finalize():
        o_ref[...] = jnp.sum(acc_ref[...]).reshape(1, 1, 1)


def focal_loss_multiclass(inputs, targets, alpha=None, gamma=2.0,
                          reduction="mean", block_rows=None):
    """inputs: [B, C] logits, targets: [B] int labels, alpha: [C] or None.

    Matches FocalLossMultiClass.forward with reduction in {'mean', 'sum'}."""
    B, C = inputs.shape
    itemsize = jnp.dtype(inputs.dtype).itemsize

    # Precompute alpha_t = alpha[targets] (trivial XLA gather) -- the kernel
    # then never touches the (1,C) class-weight vector.
    targets_i32 = targets.astype(jnp.int32)
    if alpha is None:
        alpha_t_full = jnp.ones((B, 1), dtype=jnp.float32)
    else:
        alpha_arr = jnp.asarray(alpha, dtype=jnp.float32).reshape(C)
        alpha_t_full = alpha_arr[targets_i32].reshape(B, 1)
    targets2d = targets_i32.reshape(B, 1)

    # Minimum sublane multiple per dtype packing (f32:8, bf16:16, 1-byte:32).
    if itemsize >= 4:
        sub = 8
    elif itemsize == 2:
        sub = 16
    else:
        sub = 32

    # Generation-aware VMEM budget: v5e/v6e have 128 MiB physical (default
    # scoped limit is much lower, so raise it explicitly); v7x has 64 MiB
    # physical per TensorCore -> leave headroom.
    is_v7 = _is_v7x()
    vmem_limit = (48 if is_v7 else 64) * 1024 * 1024
    budget = int(vmem_limit * 0.75)   # headroom for scratch / compiler temps

    if block_rows is None:
        # Per-row footprint: double-buffered logits tile + double-buffered
        # lane-padded (row,128) int32 targets and f32 alpha_t tiles.
        c_pad = max(128, ((C + 127) // 128) * 128)
        row_bytes = 2 * (c_pad * itemsize) + 2 * (128 * 4) + 2 * (128 * 4)
        tb = budget // max(1, row_bytes)
        tb = min(tb, 4096)
        if tb >= B:
            tb = B
        else:
            tb = max(sub, (tb // sub) * sub)
        block_rows = tb
    tb = block_rows
    assert tb == B or tb % sub == 0, (
        f"block_rows must equal B or be a multiple of {sub} for this dtype")

    total_tiles = (B + tb - 1) // tb
    # Two slices only on v7x (2 TensorCores); single slice elsewhere avoids
    # a duplicated tile of DMA/compute when total_tiles is odd.
    num_slices = 2 if (is_v7 and total_tiles >= 2) else 1
    tiles_per_slice = (total_tiles + num_slices - 1) // num_slices
    last_tile = total_tiles - 1

    def x_map(p, i):
        return (jnp.minimum(p * tiles_per_slice + i, last_tile), 0)

    def v_map(p, i):   # shared by targets and alpha_t (same (B,1) tiling)
        return (jnp.minimum(p * tiles_per_slice + i, last_tile), 0)

    kernel = functools.partial(
        _focal_loss_kernel, gamma=gamma, batch=B,
        block_rows=tb, tiles_per_slice=tiles_per_slice)

    if num_slices == 2:
        dim_sem = (pltpu.CORE_PARALLEL, pltpu.ARBITRARY)
    else:
        dim_sem = (pltpu.ARBITRARY, pltpu.ARBITRARY)

    cost = pl.CostEstimate(
        flops=int(6 * B * C),
        transcendentals=int(B * C + 2 * B),
        bytes_accessed=int(B * C * itemsize + B * 8 + num_slices * 4))

    partials = pl.pallas_call(
        kernel,
        out_shape=jax.ShapeDtypeStruct((num_slices, 1, 1), jnp.float32),
        grid_spec=pltpu.PrefetchScalarGridSpec(
            num_scalar_prefetch=0,
            grid=(num_slices, tiles_per_slice),
            in_specs=[
                pl.BlockSpec((tb, C), x_map),    # logits tile
                pl.BlockSpec((tb, 1), v_map),    # targets tile
                pl.BlockSpec((tb, 1), v_map),    # alpha_t tile
            ],
            out_specs=pl.BlockSpec((1, 1, 1), lambda p, i: (p, 0, 0)),
            scratch_shapes=[pltpu.VMEM((tb, 1), jnp.float32)],
        ),
        compiler_params=pltpu.CompilerParams(
            dimension_semantics=dim_sem,
            vmem_limit_bytes=vmem_limit),
        cost_estimate=cost,
    )(inputs, targets2d, alpha_t_full)

    total = jnp.sum(partials)
    if reduction == "mean":
        return total / jnp.float32(B)
    elif reduction == "sum":
        return total
    else:
        # TODO(synk): reduction='none' (per-sample loss output) not implemented.
        raise NotImplementedError("reduction='none' is not supported")


def _focal_loss_ref(inputs, targets, alpha, gamma=2.0, reduction="mean"):
    inputs = inputs.astype(jnp.float32)
    log_probs = jax.nn.log_softmax(inputs, axis=1)
    probs = jnp.exp(log_probs)
    onehot = jax.nn.one_hot(targets, inputs.shape[1], dtype=jnp.float32)
    pt = jnp.sum(probs * onehot, axis=1)
    log_pt = jnp.sum(log_probs * onehot, axis=1)
    focal_term = (1.0 - pt) ** gamma
    if alpha is not None:
        alpha_t = jnp.asarray(alpha, dtype=jnp.float32)[targets]
        loss = -alpha_t * focal_term * log_pt
    else:
        loss = -focal_term * log_pt
    return jnp.mean(loss) if reduction == "mean" else jnp.sum(loss)


if __name__ == "__main__":
    key = jax.random.PRNGKey(0)
    k1, k2, k3, k4 = jax.random.split(key, 4)

    # --- f32 path: B=20 with block_rows=8 exercises tiling + ragged masking.
    B, C = 20, 32
    logits = jax.random.normal(k1, (B, C), dtype=jnp.float32)
    targets = jax.random.randint(k2, (B,), 0, C, dtype=jnp.int32)
    alpha = jnp.linspace(0.5, 2.0, C, dtype=jnp.float32)

    loss_tiled = focal_loss_multiclass(logits, targets, alpha, gamma=2.0,
                                       block_rows=8)
    loss_auto = focal_loss_multiclass(logits, targets, alpha, gamma=2.0)
    loss_noalpha = focal_loss_multiclass(logits, targets, None, gamma=2.0,
                                         reduction="sum")
    jax.block_until_ready((loss_tiled, loss_auto, loss_noalpha))

    ref = _focal_loss_ref(logits, targets, alpha, gamma=2.0)
    ref_noalpha = _focal_loss_ref(logits, targets, None, gamma=2.0,
                                  reduction="sum")
    assert jnp.allclose(loss_tiled, ref, rtol=1e-5, atol=1e-6), (loss_tiled, ref)
    assert jnp.allclose(loss_auto, ref, rtol=1e-5, atol=1e-6), (loss_auto, ref)
    assert jnp.allclose(loss_noalpha, ref_noalpha, rtol=1e-5, atol=1e-6), (
        loss_noalpha, ref_noalpha)

    # --- bf16 path: B=40 with block_rows=16 (bf16 sublane packing) + ragged.
    Bb = 40
    logits_bf16 = jax.random.normal(k3, (Bb, C), dtype=jnp.float32
                                    ).astype(jnp.bfloat16)
    targets_b = jax.random.randint(k4, (Bb,), 0, C, dtype=jnp.int32)
    loss_bf16 = focal_loss_multiclass(logits_bf16, targets_b, alpha, gamma=2.0,
                                      block_rows=16)
    jax.block_until_ready(loss_bf16)
    ref_bf16 = _focal_loss_ref(logits_bf16, targets_b, alpha, gamma=2.0)
    assert jnp.allclose(loss_bf16, ref_bf16, rtol=1e-4, atol=1e-5), (
        loss_bf16, ref_bf16)

    print("KERNEL_OK")
</pallas_src>

<mosaic_0001>
module attributes {stable_mosaic.version = 11 : i64} {
  func.func @_focal_loss_kernel(%arg0: i32, %arg1: i32, %arg2: memref<8x32xf32, #tpu.memory_space<vmem>>, %arg3: memref<8x1xi32, #tpu.memory_space<vmem>>, %arg4: memref<8x1xf32, #tpu.memory_space<vmem>>, %arg5: memref<1x1x1xf32, #tpu.memory_space<vmem>>, %arg6: memref<8x1xf32, #tpu.memory_space<vmem>>) attributes {dimension_semantics = [#tpu.dimension_semantics<arbitrary>, #tpu.dimension_semantics<arbitrary>], iteration_bounds = array<i64: 1, 3>, scalar_prefetch = 0 : i64, scratch_operands = 1 : i64, tpu.core_type = #tpu.core_type<tc>, window_params = [{transform_indices = @transform_0, window_bounds = array<i64: 8, 32>}, {transform_indices = @transform_1, window_bounds = array<i64: 8, 1>}, {transform_indices = @transform_2, window_bounds = array<i64: 8, 1>}, {transform_indices = @transform_3, window_bounds = array<i64: 1, 1, 1>}]} {
    %c0_i32 = arith.constant 0 : i32
    %0 = arith.cmpi eq, %arg1, %c0_i32 : i32
    %1 = arith.extui %0 : i1 to i32
    %c0_i32_0 = arith.constant 0 : i32
    %2 = arith.cmpi ne, %1, %c0_i32_0 : i32
    scf.if %2 {
      %cst_17 = arith.constant 0.000000e+00 : f32
      %46 = vector.broadcast %cst_17 : f32 to vector<8x1xf32>
      %c0_18 = arith.constant 0 : index
      %c0_19 = arith.constant 0 : index
      %47 = vector.load %arg6[%c0_18, %c0_19] : memref<8x1xf32, #tpu.memory_space<vmem>>, vector<8x1xf32>
      tpu.vector_store %arg6[%c0_18, %c0_19], %46 {strides = array<i32>} : memref<8x1xf32, #tpu.memory_space<vmem>>, vector<8x1xf32>,
    } else {
    }
    %c0 = arith.constant 0 : index
    %c0_1 = arith.constant 0 : index
    %3 = vector.load %arg2[%c0, %c0_1] : memref<8x32xf32, #tpu.memory_space<vmem>>, vector<8x32xf32>
    %c0_2 = arith.constant 0 : index
    %c0_3 = arith.constant 0 : index
    %4 = vector.load %arg3[%c0_2, %c0_3] : memref<8x1xi32, #tpu.memory_space<vmem>>, vector<8x1xi32>
    %c0_4 = arith.constant 0 : index
    %c0_5 = arith.constant 0 : index
    %5 = vector.load %arg4[%c0_4, %c0_5] : memref<8x1xf32, #tpu.memory_space<vmem>>, vector<8x1xf32>
    %cst = arith.constant dense<0xFF800000> : vector<8xf32>
    %6 = vector.multi_reduction <maximumf>, %3, %cst [1] : vector<8x32xf32> to vector<8xf32>
    %7 = vector.shape_cast %6 : vector<8xf32> to vector<8x1xf32>
    %8 = vector.broadcast %7 : vector<8x1xf32> to vector<8x32xf32>
    %9 = arith.subf %3, %8 : vector<8x32xf32>
    %10 = math.exp %9 : vector<8x32xf32>
    %cst_6 = arith.constant dense<0.000000e+00> : vector<8xf32>
    %11 = vector.multi_reduction <add>, %10, %cst_6 [1] : vector<8x32xf32> to vector<8xf32>
    %12 = vector.shape_cast %11 : vector<8xf32> to vector<8x1xf32>
    %13 = math.log %12 : vector<8x1xf32>
    %14 = tpu.iota {dimensions = array<i32: 1>} : vector<8x32xi32>
    %15 = vector.broadcast %4 : vector<8x1xi32> to vector<8x32xi32>
    %16 = arith.cmpi eq, %14, %15 : vector<8x32xi32>
    %cst_7 = arith.constant 0.000000e+00 : f32
    %17 = vector.broadcast %cst_7 : f32 to vector<8x32xf32>
    %18 = arith.select %16, %9, %17 : vector<8x32xi1>, vector<8x32xf32>
    %cst_8 = arith.constant dense<0.000000e+00> : vector<8xf32>
    %19 = vector.multi_reduction <add>, %18, %cst_8 [1] : vector<8x32xf32> to vector<8xf32>
    %20 = vector.shape_cast %19 : vector<8xf32> to vector<8x1xf32>
    %21 = arith.subf %20, %13 : vector<8x1xf32>
    %22 = math.exp %21 : vector<8x1xf32>
    %cst_9 = arith.constant 1.000000e+00 : f32
    %23 = vector.broadcast %cst_9 : f32 to vector<8x1xf32>
    %24 = arith.subf %23, %22 : vector<8x1xf32>
    %25 = arith.mulf %24, %24 : vector<8x1xf32>
    %cst_10 = arith.constant 0.000000e+00 : f32
    %26 = vector.broadcast %cst_10 : f32 to vector<8x1xf32>
    %27 = arith.subf %26, %5 : vector<8x1xf32>
    %28 = arith.mulf %27, %25 : vector<8x1xf32>
    %29 = arith.mulf %28, %21 : vector<8x1xf32>
    %c3_i32 = arith.constant 3 : i32
    %30 = arith.muli %arg0, %c3_i32 : i32
    %31 = arith.addi %30, %arg1 : i32
    %32 = tpu.iota {dimensions = array<i32: 0>} : vector<8x1xi32>
    %c8_i32 = arith.constant 8 : i32
    %33 = arith.muli %31, %c8_i32 : i32
    %34 = vector.broadcast %33 : i32 to vector<8x1xi32>
    %35 = arith.addi %32, %34 : vector<8x1xi32>
    %c20_i32 = arith.constant 20 : i32
    %36 = vector.broadcast %c20_i32 : i32 to vector<8x1xi32>
    %37 = arith.cmpi slt, %35, %36 : vector<8x1xi32>
    %cst_11 = arith.constant 0.000000e+00 : f32
    %38 = vector.broadcast %cst_11 : f32 to vector<8x1xf32>
    %39 = arith.select %37, %29, %38 : vector<8x1xi1>, vector<8x1xf32>
    %c0_12 = arith.constant 0 : index
    %c0_13 = arith.constant 0 : index
    %40 = vector.load %arg6[%c0_12, %c0_13] : memref<8x1xf32, #tpu.memory_space<vmem>>, vector<8x1xf32>
    %41 = arith.addf %40, %39 : vector<8x1xf32>
    %c0_14 = arith.constant 0 : index
    %c0_15 = arith.constant 0 : index
    %42 = vector.load %arg6[%c0_14, %c0_15] : memref<8x1xf32, #tpu.memory_space<vmem>>, vector<8x1xf32>
    tpu.vector_store %arg6[%c0_14, %c0_15], %41 {strides = array<i32>} : memref<8x1xf32, #tpu.memory_space<vmem>>, vector<8x1xf32>,
    %c2_i32 = arith.constant 2 : i32
    %43 = arith.cmpi eq, %arg1, %c2_i32 : i32
    %44 = arith.extui %43 : i1 to i32
    %c0_i32_16 = arith.constant 0 : i32
    %45 = arith.cmpi ne, %44, %c0_i32_16 : i32
    scf.if %45 {
      %c0_17 = arith.constant 0 : index
      %c0_18 = arith.constant 0 : index
      %46 = vector.load %arg6[%c0_17, %c0_18] : memref<8x1xf32, #tpu.memory_space<vmem>>, vector<8x1xf32>
      %47 = vector.shape_cast %46 : vector<8x1xf32> to vector<1x8x1xf32>
      %cst_19 = arith.constant dense<0.000000e+00> : vector<1xf32>
      %48 = vector.multi_reduction <add>, %47, %cst_19 [1, 2] : vector<1x8x1xf32> to vector<1xf32>
      %49 = vector.shape_cast %48 : vector<1xf32> to vector<1x1x1xf32>
      %50 = vector.extract %49[0, 0, 0] : f32 from vector<1x1x1xf32>
      %51 = vector.broadcast %50 : f32 to vector<1x1x1xf32>
      %c0_20 = arith.constant 0 : index
      %c0_21 = arith.constant 0 : index
      %c0_22 = arith.constant 0 : index
      %52 = vector.load %arg5[%c0_20, %c0_21, %c0_22] : memref<1x1x1xf32, #tpu.memory_space<vmem>>, vector<1x1x1xf32>
      tpu.vector_store %arg5[%c0_20, %c0_21, %c0_22], %51 {strides = array<i32>} : memref<1x1x1xf32, #tpu.memory_space<vmem>>, vector<1x1x1xf32>,
    } else {
    }
    return
  }
  func.func @transform_0(%arg0: i32, %arg1: i32) -> (i32, i32) {
    %c3_i32 = arith.constant 3 : i32
    %0 = arith.muli %arg0, %c3_i32 : i32
    %1 = arith.addi %0, %arg1 : i32
    %c2_i32 = arith.constant 2 : i32
    %2 = arith.minsi %1, %c2_i32 : i32
    %c0_i32 = arith.constant 0 : i32
    %c0_i32_0 = arith.constant 0 : i32
    return %2, %c0_i32 : i32, i32
  }
  func.func @transform_1(%arg0: i32, %arg1: i32) -> (i32, i32) {
    %c3_i32 = arith.constant 3 : i32
    %0 = arith.muli %arg0, %c3_i32 : i32
    %1 = arith.addi %0, %arg1 : i32
    %c2_i32 = arith.constant 2 : i32
    %2 = arith.minsi %1, %c2_i32 : i32
    %c0_i32 = arith.constant 0 : i32
    %c0_i32_0 = arith.constant 0 : i32
    return %2, %c0_i32 : i32, i32
  }
  func.func @transform_2(%arg0: i32, %arg1: i32) -> (i32, i32) {
    %c3_i32 = arith.constant 3 : i32
    %0 = arith.muli %arg0, %c3_i32 : i32
    %1 = arith.addi %0, %arg1 : i32
    %c2_i32 = arith.constant 2 : i32
    %2 = arith.minsi %1, %c2_i32 : i32
    %c0_i32 = arith.constant 0 : i32
    %c0_i32_0 = arith.constant 0 : i32
    return %2, %c0_i32 : i32, i32
  }
  func.func @transform_3(%arg0: i32, %arg1: i32) -> (i32, i32, i32) {
    %c0_i32 = arith.constant 0 : i32
    %c0_i32_0 = arith.constant 0 : i32
    %c0_i32_1 = arith.constant 0 : i32
    return %arg0, %c0_i32, %c0_i32_0 : i32, i32, i32
  }
}

</mosaic_0001>

<llo_original>
// kernel: tpu_custom_call.1
$region0: #{tpu_custom_call.1}
  #allocation0 [shape = 'u32[]', space=smem, size = 0x4, offset = 0x4, fixed_abs, tag = 'smem constant byte address 0x4 - core index']
  #allocation1 [shape = 'u32[144,128]{1,0:T(1,128)}', space=vmem, size = 0x12000, scoped, tag = 'internal scratch']
  #allocation2 [shape = 'f32[8,1]{1,0:T(8,128)}', space=vmem, size = 0x1000, scoped, tag = 'scratch operand']
  %s0 = inlined_call_operand.vmem [shape: f32[20,32], index: 0, kind: input, shape index: {}]
  %s1 = inlined_call_operand.vmem [shape: s32[20,1], index: 1, kind: input, shape index: {}]
  %s2 = inlined_call_operand.vmem [shape: f32[20,1], index: 2, kind: input, shape index: {}]
  %s3 = inlined_call_operand.hbm [shape: f32[1,1,1], index: 3, kind: output, shape index: {}]
  %s4 = sld [smem:[#allocation0]]
  $region53: #{tpu_custom_call.1} parent=0
    _
  %s6 = ssub.s32 1, %s4
  %s7 = scalar_select 0, %s6, %s4
  $region1: #{tpu_custom_call.1} parent=0
    #allocation3 [shape = 'u8[512]{0}', space=vmem, size = 0x400, scoped, tag = 'output window, operand 0, single buffered']
    #allocation4 [shape = 's32[2]{0}', space=sflag, size = 0x8, scoped, tag = 'scoped memory for tpu_custom_call.1']
    %8 = vsyncpa [#allocation4], 0
    loop: start=0, step=1, limit=5
    $region2: #{tpu_custom_call.1} parent=1 // loop_pre_header
      _
    $region3: #{tpu_custom_call.1} parent=1 // loop_header
      %s10 = sphi 0, %s14
      %p11 = scmp.ge.s32.totalorder %s10, 5
      %s17 = sphi 0, %s29
      %s18 = sphi 0, %s25
      %s19 = sphi 0, %s17
      %s20 = sphi 0, %s18
      %s21 = sphi 0, %s19
      %s22 = sphi 0, %s20
      %s40 = sphi 0, %s42
      %s43 = sphi 0, %s40
      %s44 = sphi 0, %s43
      %s60 = sphi 0, %s44
      %s74 = sphi 0, %s76
      %s77 = sphi 0, %s74
      %s78 = sphi 0, %s77
      %s94 = sphi 0, %s78
      %s108 = sphi 0, %s110
      %s111 = sphi 0, %s108
      %s112 = sphi 0, %s111
      %s128 = sphi 0, %s112
      %s134 = sphi 0, %s136
      %s137 = sphi 0, %s134
      %s138 = sphi 0, %s137
      %s154 = sphi 0, %s138
    $region4: #{tpu_custom_call.1} parent=1 // loop_header_branch
      %13 = sbr.rel (%p11) target = $region8
    $region5: #{tpu_custom_call.1} parent=1 // loop_body
      %s15 = ssub.s32 %s10, 1
      %s16 = ssub.s32 %s10, 2
      %s23 = sadd.s32 1, %s18
      %p24 = scmp.ge.s32.totalorder %s23, 3
      %s25 = scalar_select %p24, 0, %s23
      %s26 = sadd.s32 1, %s17
      %s27 = scalar_select %p24, %s26, %s17
      %p28 = scmp.ge.s32.totalorder %s27, 1
      %s29 = scalar_select %p28, 0, %s27
      %s30 = smul.u32 %s17, 3
      %s31 = sadd.s32 %s30, %s18
      %p32 = scmp.lt.s32.totalorder %s31, 2
      %s33 = scalar_select %p32, %s31, 2
      %s34 = smul.u32 %s29, 3
      %s35 = sadd.s32 %s34, %s25
      %p36 = scmp.lt.s32.totalorder %s35, 2
      %s37 = scalar_select %p36, %s35, 2
      %s38 = ssub.s32 %s33, %s37
      %p39 = scmp.eq.s32.totalorder %s38, 0
      %s41 = sadd.s32 %s40, 1
      %s42 = scalar_select %p39, %s40, %s41
      %p45 = pneg %p39
      %p46 = scmp.eq.s32.totalorder %s10, 2
      %p47 = por %p45, %p46
      %p48 = scmp.ne.s32.totalorder %s40, %s43
      %p49 = scmp.eq.s32.totalorder %s10, 0
      %p50 = por %p48, %p49
      %p51 = scmp.ne.s32.totalorder %s40, %s43
      %p52 = scmp.eq.s32.totalorder %s15, 2
      %p53 = por %p51, %p52
      %p54 = scmp.ne.s32.totalorder %s43, %s44
      %p55 = scmp.eq.s32.totalorder %s15, 0
      %p56 = por %p54, %p55
      %p57 = scmp.ne.s32.totalorder %s43, %s44
      %p58 = scmp.eq.s32.totalorder %s16, 2
      %p59 = por %p57, %p58
      %p61 = scmp.ne.s32.totalorder %s44, %s60
      %p62 = scmp.eq.s32.totalorder %s16, 0
      %p63 = por %p61, %p62
      %s64 = smul.u32 %s17, 3
      %s65 = sadd.s32 %s64, %s18
      %p66 = scmp.lt.s32.totalorder %s65, 2
      %s67 = scalar_select %p66, %s65, 2
      %s68 = smul.u32 %s29, 3
      %s69 = sadd.s32 %s68, %s25
      %p70 = scmp.lt.s32.totalorder %s69, 2
      %s71 = scalar_select %p70, %s69, 2
      %s72 = ssub.s32 %s67, %s71
      %p73 = scmp.eq.s32.totalorder %s72, 0
      %s75 = sadd.s32 %s74, 1
      %s76 = scalar_select %p73, %s74, %s75
      %p79 = pneg %p73
      %p80 = scmp.eq.s32.totalorder %s10, 2
      %p81 = por %p79, %p80
      %p82 = scmp.ne.s32.totalorder %s74, %s77
      %p83 = scmp.eq.s32.totalorder %s10, 0
      %p84 = por %p82, %p83
      %p85 = scmp.ne.s32.totalorder %s74, %s77
      %p86 = scmp.eq.s32.totalorder %s15, 2
      %p87 = por %p85, %p86
      %p88 = scmp.ne.s32.totalorder %s77, %s78
      %p89 = scmp.eq.s32.totalorder %s15, 0
      %p90 = por %p88, %p89
      %p91 = scmp.ne.s32.totalorder %s77, %s78
      %p92 = scmp.eq.s32.totalorder %s16, 2
      %p93 = por %p91, %p92
      %p95 = scmp.ne.s32.totalorder %s78, %s94
      %p96 = scmp.eq.s32.totalorder %s16, 0
      %p97 = por %p95, %p96
      %s98 = smul.u32 %s17, 3
      %s99 = sadd.s32 %s98, %s18
      %p100 = scmp.lt.s32.totalorder %s99, 2
      %s101 = scalar_select %p100, %s99, 2
      %s102 = smul.u32 %s29, 3
      %s103 = sadd.s32 %s102, %s25
      %p104 = scmp.lt.s32.totalorder %s103, 2
      %s105 = scalar_select %p104, %s103, 2
      %s106 = ssub.s32 %s101, %s105
      %p107 = scmp.eq.s32.totalorder %s106, 0
      %s109 = sadd.s32 %s108, 1
      %s110 = scalar_select %p107, %s108, %s109
      %p113 = pneg %p107
      %p114 = scmp.eq.s32.totalorder %s10, 2
      %p115 = por %p113, %p114
      %p116 = scmp.ne.s32.totalorder %s108, %s111
      %p117 = scmp.eq.s32.totalorder %s10, 0
      %p118 = por %p116, %p117
      %p119 = scmp.ne.s32.totalorder %s108, %s111
      %p120 = scmp.eq.s32.totalorder %s15, 2
      %p121 = por %p119, %p120
      %p122 = scmp.ne.s32.totalorder %s111, %s112
      %p123 = scmp.eq.s32.totalorder %s15, 0
      %p124 = por %p122, %p123
      %p125 = scmp.ne.s32.totalorder %s111, %s112
      %p126 = scmp.eq.s32.totalorder %s16, 2
      %p127 = por %p125, %p126
      %p129 = scmp.ne.s32.totalorder %s112, %s128
      %p130 = scmp.eq.s32.totalorder %s16, 0
      %p131 = por %p129, %p130
      %s132 = ssub.s32 %s17, %s29
      %p133 = scmp.eq.s32.totalorder %s132, 0
      %s135 = sadd.s32 %s134, 1
      %s136 = scalar_select %p133, %s134, %s135
      %p139 = pneg %p133
      %p140 = scmp.eq.s32.totalorder %s10, 2
      %p141 = por %p139, %p140
      %p142 = scmp.ne.s32.totalorder %s134, %s137
      %p143 = scmp.eq.s32.totalorder %s10, 0
      %p144 = por %p142, %p143
      %p145 = scmp.ne.s32.totalorder %s134, %s137
      %p146 = scmp.eq.s32.totalorder %s15, 2
      %p147 = por %p145, %p146
      %p148 = scmp.ne.s32.totalorder %s137, %s138
      %p149 = scmp.eq.s32.totalorder %s15, 0
      %p150 = por %p148, %p149
      %p151 = scmp.ne.s32.totalorder %s137, %s138
      %p152 = scmp.eq.s32.totalorder %s16, 2
      %p153 = por %p151, %p152
      %p155 = scmp.ne.s32.totalorder %s138, %s154
      %p156 = scmp.eq.s32.totalorder %s16, 0
      %p157 = por %p155, %p156
      %p158 = scmp.le.s32.totalorder 1, %s10
      %p159 = scmp.lt.s32.totalorder %s10, 4
      %p160 = pnand %p158, %p159
      %p161 = pneg %p160
      // Predicated region
      $region9: #{tpu_custom_call.1} parent=5 // pred_check
        _
      $region10: #{tpu_custom_call.1} parent=5 // pred_check_branch
        %163 = sbr.rel (%p160) target = $region12
      $region11: #{tpu_custom_call.1} parent=5 // pred_region
        %s164 = ssub.s32 %s10, 1
      $region12: #{tpu_custom_call.1} parent=5 // pred_fallthru
        _
      %p165 = scmp.lt.s32.totalorder %s10, 3
      // Predicated region
      $region13: #{tpu_custom_call.1} parent=5 // pred_check
        %p166 = pneg %p165
      $region14: #{tpu_custom_call.1} parent=5 // pred_check_branch
        %168 = sbr.rel (%p166) target = $region16
      $region15: #{tpu_custom_call.1} parent=5 // pred_region
        // Predicated region
        $region17: #{tpu_custom_call.1} parent=15 // pred_check
          %p169 = pneg %p50
        $region18: #{tpu_custom_call.1} parent=15 // pred_check_branch
          %171 = sbr.rel (%p169) target = $region20
        $region19: #{tpu_custom_call.1} parent=15 // pred_region
          %s172 = smul.u32 %s17, 3
          %s173 = sadd.s32 %s172, %s18
          %p174 = scmp.lt.s32.totalorder %s173, 2
          %s175 = scalar_select %p174, %s173, 2
          %p176 = scmp.lt.s32.totalorder %s175, 2
          %s177 = scalar_select %p176, %s175, 2
          %s178 = smul.addr %s177, 8
          %s179 = scalar_lea.vmem %s0, %s178
          %s180 = smul.u32 %s17, 3
          %s181 = sadd.s32 %s180, %s18
          %p182 = scmp.lt.s32.totalorder %s181, 2
          %s183 = scalar_select %p182, %s181, 2
        $region20: #{tpu_custom_call.1} parent=15 // pred_fallthru
          _
        // Predicated region
        $region21: #{tpu_custom_call.1} parent=15 // pred_check
          %p184 = pneg %p84
        $region22: #{tpu_custom_call.1} parent=15 // pred_check_branch
          %186 = sbr.rel (%p184) target = $region24
        $region23: #{tpu_custom_call.1} parent=15 // pred_region
          %s187 = smul.u32 %s17, 3
          %s188 = sadd.s32 %s187, %s18
          %p189 = scmp.lt.s32.totalorder %s188, 2
          %s190 = scalar_select %p189, %s188, 2
          %p191 = scmp.lt.s32.totalorder %s190, 2
          %s192 = scalar_select %p191, %s190, 2
          %s193 = smul.addr %s192, 8
          %s194 = scalar_lea.vmem %s1, %s193
          %s195 = smul.u32 %s17, 3
          %s196 = sadd.s32 %s195, %s18
          %p197 = scmp.lt.s32.totalorder %s196, 2
          %s198 = scalar_select %p197, %s196, 2
        $region24: #{tpu_custom_call.1} parent=15 // pred_fallthru
          _
        // Predicated region
        $region25: #{tpu_custom_call.1} parent=15 // pred_check
          %p199 = pneg %p118
        $region26: #{tpu_custom_call.1} parent=15 // pred_check_branch
          %201 = sbr.rel (%p199) target = $region28
        $region27: #{tpu_custom_call.1} parent=15 // pred_region
          %s202 = smul.u32 %s17, 3
          %s203 = sadd.s32 %s202, %s18
          %p204 = scmp.lt.s32.totalorder %s203, 2
          %s205 = scalar_select %p204, %s203, 2
          %p206 = scmp.lt.s32.totalorder %s205, 2
          %s207 = scalar_select %p206, %s205, 2
          %s208 = smul.addr %s207, 8
          %s209 = scalar_lea.vmem %s2, %s208
          %s210 = smul.u32 %s17, 3
          %s211 = sadd.s32 %s210, %s18
          %p212 = scmp.lt.s32.totalorder %s211, 2
          %s213 = scalar_select %p212, %s211, 2
        $region28: #{tpu_custom_call.1} parent=15 // pred_fallthru
          _
      $region16: #{tpu_custom_call.1} parent=5 // pred_fallthru
        _
      %p214 = scmp.le.s32.totalorder 1, %s10
      %p215 = scmp.lt.s32.totalorder %s10, 4
      %p216 = pnand %p214, %p215
      %p217 = pneg %p216
      // Predicated region
      $region29: #{tpu_custom_call.1} parent=5 // pred_check
        _
      $region30: #{tpu_custom_call.1} parent=5 // pred_check_branch
        %219 = sbr.rel (%p216) target = $region32
      $region31: #{tpu_custom_call.1} parent=5 // pred_region
        %s220 = ssub.s32 %s10, 1
        %s221 = smul.u32 %s19, 3
        %s222 = sadd.s32 %s221, %s20
        %p223 = scmp.lt.s32.totalorder %s222, 2
        %s224 = scalar_select %p223, %s222, 2
        %p225 = scmp.lt.s32.totalorder %s224, 2
        %s226 = scalar_select %p225, %s224, 2
        %s227 = smul.addr %s226, 8
        %s228 = scalar_lea.vmem %s0, %s227
        %p229 = pneg %p56
        %p230 = pneg %p53
        %s231 = smul.u32 %s19, 3
        %s232 = sadd.s32 %s231, %s20
        %p233 = scmp.lt.s32.totalorder %s232, 2
        %s234 = scalar_select %p233, %s232, 2
        %p235 = scmp.lt.s32.totalorder %s234, 2
        %s236 = scalar_select %p235, %s234, 2
        %s237 = smul.addr %s236, 8
        %s238 = scalar_lea.vmem %s1, %s237
        %p239 = pneg %p90
        %p240 = pneg %p87
        %s241 = smul.u32 %s19, 3
        %s242 = sadd.s32 %s241, %s20
        %p243 = scmp.lt.s32.totalorder %s242, 2
        %s244 = scalar_select %p243, %s242, 2
        %p245 = scmp.lt.s32.totalorder %s244, 2
        %s246 = scalar_select %p245, %s244, 2
        %s247 = smul.addr %s246, 8
        %s248 = scalar_lea.vmem %s2, %s247
        %p249 = pneg %p124
        %p250 = pneg %p121
        %p251 = pneg %p150
        %p252 = pneg %p147
        %s253 = smul.u32 %s19, 3
        %s254 = sadd.s32 %s253, %s20
        %p255 = scmp.lt.s32.totalorder %s254, 2
        %s256 = scalar_select %p255, %s254, 2
        %p257 = scmp.lt.s32.totalorder %s256, 2
        %s258 = scalar_select %p257, %s256, 2
        %s259 = smul.addr %s258, 8
        %s260 = scalar_lea.vmem %s0, %s259
        %s261 = smul.u32 %s19, 3
        %s262 = sadd.s32 %s261, %s20
        %p263 = scmp.lt.s32.totalorder %s262, 2
        %s264 = scalar_select %p263, %s262, 2
        %s265 = smul.u32 %s19, 3
        %s266 = sadd.s32 %s265, %s20
        %p267 = scmp.lt.s32.totalorder %s266, 2
        %s268 = scalar_select %p267, %s266, 2
        %p269 = scmp.lt.s32.totalorder %s268, 2
        %s270 = scalar_select %p269, %s268, 2
        %s271 = smul.addr %s270, 8
        %s272 = scalar_lea.vmem %s1, %s271
        %s273 = smul.u32 %s19, 3
        %s274 = sadd.s32 %s273, %s20
        %p275 = scmp.lt.s32.totalorder %s274, 2
        %s276 = scalar_select %p275, %s274, 2
        %s277 = smul.u32 %s19, 3
        %s278 = sadd.s32 %s277, %s20
        %p279 = scmp.lt.s32.totalorder %s278, 2
        %s280 = scalar_select %p279, %s278, 2
        %p281 = scmp.lt.s32.totalorder %s280, 2
        %s282 = scalar_select %p281, %s280, 2
        %s283 = smul.addr %s282, 8
        %s284 = scalar_lea.vmem %s2, %s283
        %s285 = smul.u32 %s19, 3
        %s286 = sadd.s32 %s285, %s20
        %p287 = scmp.lt.s32.totalorder %s286, 2
        %s288 = scalar_select %p287, %s286, 2
        %p289 = scmp.eq.s32.totalorder %s20, 0
        // Predicated region
        $region33: #{tpu_custom_call.1} parent=31 // pred_check
          %p290 = pneg %p289
        $region34: #{tpu_custom_call.1} parent=31 // pred_check_branch
          %292 = sbr.rel (%p290) target = $region36
        $region35: #{tpu_custom_call.1} parent=31 // pred_region
          %vm293 = vcmask 7168
          %294 = vst.msk [vmem:[#allocation2] sm:$0xff] %vm293, 0.0
        $region36: #{tpu_custom_call.1} parent=31 // pred_fallthru
          _
        %v295 = vld [vmem:[%s260] sm:$0xff]
        %v296 = vld [vmem:[%s272] sm:$0xff]
        %v297 = vld [vmem:[%s284] sm:$0xff]
        %vm298 = vcmask 261120
        %v299 = vsel %vm298, %v295, -inf
        %300 = vmax.xlane.f32.xlu0 %v299
        %v301 = vpop.xlane.xlu0 %300
        %v302 = vsub.f32 %v295, %v301
        %v303 = vmul.f32 %v302, 1.442695
        %v304 = vpow.pop %v303
        %v305 = vsel %vm298, %v304, 0.0
        %306 = vadd.xlane.f32.xlu0 %v305
        %v307 = vpop.xlane.xlu0 %306
        %v308 = vlog2.pop %v307
        %v309 = vmul.f32 %v308, 0.6931472
        %v310 = vlaneseq
        %v311 = vand.u32 %v310, 127
        %312 = vset.pattern.permute.xlu0 0
        %313 = vperm.xlu0 %312, %v296
        %v314 = vpop.permute.xlu0 %313
        %vm315 = vcmp.eq.s32.totalorder %v311, %v314
        %v316 = vsel %vm315, %v302, 0.0
        %v317 = vsel %vm298, %v316, 0.0
        %318 = vadd.xlane.f32.xlu0 %v317
        %v319 = vpop.xlane.xlu0 %318
        %v320 = vsub.f32 %v319, %v309
        %v321 = vmul.f32 %v320, 1.442695
        %v322 = vpow.pop %v321
        %v323 = vsub.f32 1.0, %v322
        %v324 = vmul.f32 %v323, %v323
        %v325 = vsub.f32 0.0, %v297
        %v326 = vmul.f32 %v325, %v324
        %v327 = vmul.f32 %v326, %v320
        %s328 = smul.u32 %s19, 3
        %s329 = sadd.s32 %s328, %s20
        %v330 = vlaneseq
        %v331 = vshrl.u32 %v330, 7
        %s332 = smul.u32 %s329, 8
        %v333 = vstv %s332
        %v334 = vadd.s32 %v331, %v333
        %vm335 = vcmp.lt.s32.totalorder %v334, 20
        %v336 = vsel %vm335, %v327, 0.0
        %v337 = vld [vmem:[#allocation2] sm:$0xff]
        %v338 = vadd.f32 %v337, %v336
        %vm339 = vcmask 7168
        %340 = vst.msk [vmem:[#allocation2] sm:$0xff] %vm339, %v338
        %p341 = scmp.eq.s32.totalorder %s20, 2
        // Predicated region
        $region37: #{tpu_custom_call.1} parent=31 // pred_check
          %p342 = pneg %p341
        $region38: #{tpu_custom_call.1} parent=31 // pred_check_branch
          %344 = sbr.rel (%p342) target = $region40
        $region39: #{tpu_custom_call.1} parent=31 // pred_region
          %v345 = vld [vmem:[#allocation2] sm:$0xff]
          %v346 = vsel %vm339, %v345, 0.0
          %347 = vadd.xlane.f32.xlu0 %v346
          %v348 = vpop.xlane.xlu0 %347
          %v349 = vrot.slane %v348, 4
          %v350 = vadd.f32 %v348, %v349
          %v351 = vrot.slane %v350, 2
          %v352 = vadd.f32 %v350, %v351
          %v353 = vrot.slane %v352, 1
          %v354 = vadd.f32 %v352, %v353
          %s355 = vtos %v354
          %v356 = vstv %s355
          %vm357 = vcmask 0
          %358 = vst.msk [vmem:[#allocation3] sm:$0x1] %vm357, %v356
        $region40: #{tpu_custom_call.1} parent=31 // pred_fallthru
          _
        // Predicated region
        $region41: #{tpu_custom_call.1} parent=31 // pred_check
          %p359 = pneg %p147
        $region42: #{tpu_custom_call.1} parent=31 // pred_check_branch
          %361 = sbr.rel (%p359) target = $region44
        $region43: #{tpu_custom_call.1} parent=31 // pred_region
          %s363 = ssub.s32 16, 16
          %364 = vsyncadd [#allocation4], %s363
          %s365 = smul.addr %s19, 16
          %s366 = scalar_lea.hbm %s3, %s365
          %s368 = sshll.u32 [#allocation3], 4
          %s369 = int_to_ptr.vmem [resolvable:$true] %s368
          %371 = dma.vmem_to_hbm [thread:$0]  %s369, 16, %s366, [#allocation4]
        $region44: #{tpu_custom_call.1} parent=31 // pred_fallthru
          _
        // Predicated region
        $region45: #{tpu_custom_call.1} parent=31 // pred_check
          %p372 = pneg %p147
        $region46: #{tpu_custom_call.1} parent=31 // pred_check_branch
          %374 = sbr.rel (%p372) target = $region48
        $region47: #{tpu_custom_call.1} parent=31 // pred_region
          %375 = dma.done [#allocation4], 16
        $region48: #{tpu_custom_call.1} parent=31 // pred_fallthru
          _
      $region32: #{tpu_custom_call.1} parent=5 // pred_fallthru
        _
      %p376 = scmp.le.s32.totalorder 2, %s10
      // Predicated region
      $region49: #{tpu_custom_call.1} parent=5 // pred_check
        %p377 = pneg %p376
      $region50: #{tpu_custom_call.1} parent=5 // pred_check_branch
        %379 = sbr.rel (%p377) target = $region52
      $region51: #{tpu_custom_call.1} parent=5 // pred_region
        %s380 = ssub.s32 %s10, 2
      $region52: #{tpu_custom_call.1} parent=5 // pred_fallthru
        _
    $region6: #{tpu_custom_call.1} parent=1 // loop_footer
      %s14 = sadd.s32 1, %s10
    $region7: #{tpu_custom_call.1} parent=1 // loop_footer_branch
      %9 = sbr.rel target = $region3
    $region8: #{tpu_custom_call.1} parent=1 // loop_exit
      _
    %381 = vsyncpa [#allocation4], 1
    %s382 = scalar_lea.sflag [#allocation4], 1
    %383 = vsyncpa %s382, 1

</llo_original>
